<compile_context>
chip_gen: v6e
topology: v6e:2x2x1
jax: 0.10.0
libtpu: 0.0.40
codegen_flags: <defaults>
</compile_context>

<pallas_src>
import functools

import jax
import jax.numpy as jnp
from jax.experimental import pallas as pl
from jax.experimental.pallas import tpu as pltpu


_VMEM_LIMIT_BYTES = 32 * 1024 * 1024   # explicit scoped-VMEM limit (safe on v5e/v6e/v7x)


# ----------------------------- Pallas kernel ------------------------------

def _patch_proj_kernel(x_ref, w_ref, b_ref, g2_ref, b2_ref, o_ref, *, eps):
    # --- LayerNorm over patch_dim (affine already folded into W/b), f32 math ---
    x = x_ref[...].astype(jnp.float32)                               # (TM, K)
    mu = jnp.mean(x, axis=-1, keepdims=True)
    var = jnp.mean(jnp.square(x - mu), axis=-1, keepdims=True)
    xn = (x - mu) * jax.lax.rsqrt(var + eps)

    # --- Linear(patch_dim -> embed_dim): MXU matmul, f32 accumulation ---
    y = jnp.dot(xn.astype(w_ref.dtype), w_ref[...],
                preferred_element_type=jnp.float32)
    y = y + b_ref[...].astype(jnp.float32)                           # (TM, E)

    # --- LayerNorm over embed_dim ---
    mu2 = jnp.mean(y, axis=-1, keepdims=True)
    var2 = jnp.mean(jnp.square(y - mu2), axis=-1, keepdims=True)
    yn = (y - mu2) * jax.lax.rsqrt(var2 + eps)
    o_ref[...] = (yn * g2_ref[...].astype(jnp.float32)
                  + b2_ref[...].astype(jnp.float32)).astype(o_ref.dtype)


# --------------------------- tiling / param prep ---------------------------

def _sublane_align(dtype):
    # sub-32-bit dtypes pack along sublanes: bf16 vreg is [16,128], int8 [32,128]
    return {4: 8, 2: 16, 1: 32}.get(jnp.dtype(dtype).itemsize, 8)


def _choose_row_tile(m, k, n, in_dtype, out_dtype, param_dtype,
                     vmem_budget_bytes=int(0.75 * _VMEM_LIMIT_BYTES),
                     tm_max=2048):
    """Largest row tile that (a) fits the VMEM budget with double-buffered
    in/out tiles + single-buffered resident params and (b) leaves >= 2 grid
    steps so v7x can shard the 'parallel' row axis across both TensorCores."""
    in_sz = jnp.dtype(in_dtype).itemsize
    out_sz = jnp.dtype(out_dtype).itemsize
    p_sz = jnp.dtype(param_dtype).itemsize
    align = _sublane_align(in_dtype)

    resident = k * n * p_sz + 3 * n * 4          # Buffered(1): W + bias + LN2 g/b

    def footprint(tm):
        io = 2 * tm * (k * in_sz + n * out_sz)   # double-buffered row tiles
        tmp = tm * (k + n) * 4                   # in-kernel f32 intermediates
        return resident + io + tmp

    half_m = max(align, (((m + 1) // 2 + align - 1) // align) * align)
    tm = max(align, (min(tm_max, half_m) // align) * align)
    while tm > align and footprint(tm) > vmem_budget_bytes:
        tm = max(align, (tm // 2 // align) * align)
    return tm


def fold_ln1_into_linear(params):
    """Fold LN1's affine into the Linear: W' = diag(g1) @ W ; b' = b + b1 @ W."""
    w = params["w"]
    w32 = w.astype(jnp.float32)
    g1 = params["ln1_g"].reshape(-1).astype(jnp.float32)
    b1 = params["ln1_b"].reshape(-1).astype(jnp.float32)
    b = params["b"].reshape(-1).astype(jnp.float32)
    return {
        "w": (w32 * g1[:, None]).astype(w.dtype),
        "b": (b + b1 @ w32).reshape(1, -1),                  # f32
        "ln2_g": params["ln2_g"].reshape(1, -1),
        "ln2_b": params["ln2_b"].reshape(1, -1),
    }


# ---------------------------- fused projection -----------------------------

def patch_embed_proj(patches, folded, *, eps=1e-5, row_block=None):
    """Fused LayerNorm -> Linear -> LayerNorm over rows of `patches` (M, K)."""
    m, k = patches.shape
    w = folded["w"]
    n = w.shape[1]
    dtype = patches.dtype
    align = _sublane_align(dtype)

    if row_block is None:
        tm = _choose_row_tile(m, k, n, dtype, dtype, w.dtype)
    else:
        tm = max(align, (min(row_block, m) // align) * align)

    m_pad = pl.cdiv(m, tm) * tm
    if m_pad != m:
        patches = jnp.pad(patches, ((0, m_pad - m), (0, 0)))

    def _const_spec(shape):
        # Constant-index operands: resident in VMEM, single pipeline buffer.
        return pl.BlockSpec(shape, lambda *_: (0, 0),
                            pipeline_mode=pl.Buffered(1))

    out = pl.pallas_call(
        functools.partial(_patch_proj_kernel, eps=eps),
        out_shape=jax.ShapeDtypeStruct((m_pad, n), dtype),
        grid=(m_pad // tm,),
        in_specs=[
            pl.BlockSpec((tm, k), lambda i: (i, 0)),   # patch rows (tiled)
            _const_spec((k, n)),                       # folded Linear weight
            _const_spec((1, n)),                       # folded Linear bias
            _const_spec((1, n)),                       # LN2 gamma
            _const_spec((1, n)),                       # LN2 beta
        ],
        out_specs=pl.BlockSpec((tm, n), lambda i: (i, 0)),
        compiler_params=pltpu.CompilerParams(
            dimension_semantics=("parallel",),
            vmem_limit_bytes=_VMEM_LIMIT_BYTES),
    )(patches, folded["w"], folded["b"], folded["ln2_g"], folded["ln2_b"])

    return out[:m] if m_pad != m else out


# ----------------------------- module wrapper ------------------------------

def _im2col_single_copy(x_nchw, patch_size):
    """NCHW -> (B*N, patch_dim) with exactly ONE materialized transpose."""
    b, c, h, w = x_nchw.shape
    hn, wn = h // patch_size, w // patch_size
    # free reshape (contiguous split) -> one 6-D transpose (the only copy)
    # -> free reshape (contiguous merge). Element order matches torch's
    # permute(0,2,3,1).view(...).permute(0,1,3,2,4,5) exactly.
    x6 = x_nchw.reshape(b, c, hn, patch_size, wn, patch_size)
    x6 = jnp.transpose(x6, (0, 2, 4, 3, 5, 1))                # (b,hn,wn,ps,ps,c)
    return x6.reshape(b * hn * wn, c * patch_size * patch_size), (hn, wn)


def patch_embedding(x_nchw, params, *, patch_size, eps=1e-5, row_block=None):
    """Matches PatchEmbedding.forward: returns (tokens (B, N, E), (h_nb, w_nb))."""
    b = x_nchw.shape[0]
    # TODO(synk): a fully in-kernel im2col (NHWC block + in-kernel rearrange)
    # would avoid even this single XLA copy, but the C=3 narrow-lane relayout it
    # requires is risky/slow under Mosaic, so the one-transpose XLA path is kept.
    patches, (hn, wn) = _im2col_single_copy(x_nchw, patch_size)
    folded = fold_ln1_into_linear(params)
    tokens = patch_embed_proj(patches, folded, eps=eps, row_block=row_block)
    # TODO(synk): for production PVT stage-1 shapes (embed_dim=64 < 128), pad the
    # output lane dim to 128 in out_specs and slice afterwards to keep stores
    # lane-dense.
    return tokens.reshape(b, hn * wn, -1), (hn, wn)


# ----------------------------- pure-JAX reference --------------------------

def patch_embedding_ref(x_nchw, params, *, patch_size, eps=1e-5):
    b, c, h, w = x_nchw.shape
    hn, wn = h // patch_size, w // patch_size
    xt = jnp.transpose(x_nchw, (0, 2, 3, 1))
    xt = xt.reshape(b, hn, patch_size, wn, patch_size, c)
    xt = jnp.transpose(xt, (0, 1, 3, 2, 4, 5)).reshape(b, hn * wn, -1)

    def ln(t, g, bb):
        mu = jnp.mean(t, -1, keepdims=True)
        var = jnp.mean((t - mu) ** 2, -1, keepdims=True)
        return (t - mu) / jnp.sqrt(var + eps) * g.reshape(-1) + bb.reshape(-1)

    y = ln(xt, params["ln1_g"], params["ln1_b"])
    y = y @ params["w"] + params["b"].reshape(-1)
    y = ln(y, params["ln2_g"], params["ln2_b"])
    return y, (hn, wn)


# --------------------------------- main ------------------------------------

if __name__ == "__main__":
    # Small shapes consistent with the module: img 64x64, patch 8 -> 64 patches
    # per image, patch_dim = 3*8*8 = 192, embed_dim = 128 (lane-dense output).
    B, C_IN, IMG, PS, EMBED = 2, 3, 64, 8, 128
    dtype = jnp.float32
    patch_dim = C_IN * PS * PS

    key = jax.random.PRNGKey(0)
    kx, kw, kb, kg1, kb1, kg2, kb2 = jax.random.split(key, 7)
    params = {
        "ln1_g": 1.0 + 0.1 * jax.random.normal(kg1, (1, patch_dim), dtype),
        "ln1_b": 0.1 * jax.random.normal(kb1, (1, patch_dim), dtype),
        "w": jax.random.normal(kw, (patch_dim, EMBED), dtype) * (patch_dim ** -0.5),
        "b": 0.1 * jax.random.normal(kb, (1, EMBED), dtype),
        "ln2_g": 1.0 + 0.1 * jax.random.normal(kg2, (1, EMBED), dtype),
        "ln2_b": 0.1 * jax.random.normal(kb2, (1, EMBED), dtype),
    }
    x = jax.random.normal(kx, (B, C_IN, IMG, IMG), dtype)

    # Auto tile chooser -> tm=64, grid of 2 parallel steps over 128 patch rows.
    out, (hn, wn) = patch_embedding(x, params, patch_size=PS)
    out = jax.block_until_ready(out)

    ref, (hn_r, wn_r) = patch_embedding_ref(x, params, patch_size=PS)
    assert out.shape == (B, (IMG // PS) ** 2, EMBED), out.shape
    assert (hn, wn) == (hn_r, wn_r) == (IMG // PS, IMG // PS)
    max_err = float(jnp.max(jnp.abs(out - ref)))
    assert jnp.allclose(out, ref, rtol=1e-4, atol=5e-4), max_err

    print("KERNEL_OK")
</pallas_src>

<mosaic_0001>
module attributes {stable_mosaic.version = 11 : i64} {
  func.func @_patch_proj_kernel(%arg0: i32, %arg1: memref<64x192xf32, #tpu.memory_space<vmem>>, %arg2: memref<192x128xf32, #tpu.memory_space<vmem>>, %arg3: memref<1x128xf32, #tpu.memory_space<vmem>>, %arg4: memref<1x128xf32, #tpu.memory_space<vmem>>, %arg5: memref<1x128xf32, #tpu.memory_space<vmem>>, %arg6: memref<64x128xf32, #tpu.memory_space<vmem>>) attributes {dimension_semantics = [#tpu.dimension_semantics<parallel>], iteration_bounds = array<i64: 2>, scalar_prefetch = 0 : i64, scratch_operands = 0 : i64, tpu.core_type = #tpu.core_type<tc>, window_params = [{transform_indices = @transform_0, window_bounds = array<i64: 64, 192>}, {pipeline_mode = #tpu.pipeline_mode<synchronous>, transform_indices = @transform_1, window_bounds = array<i64: 192, 128>}, {pipeline_mode = #tpu.pipeline_mode<synchronous>, transform_indices = @transform_2, window_bounds = array<i64: 1, 128>}, {pipeline_mode = #tpu.pipeline_mode<synchronous>, transform_indices = @transform_3, window_bounds = array<i64: 1, 128>}, {pipeline_mode = #tpu.pipeline_mode<synchronous>, transform_indices = @transform_4, window_bounds = array<i64: 1, 128>}, {transform_indices = @transform_5, window_bounds = array<i64: 64, 128>}]} {
    %c0 = arith.constant 0 : index
    %c0_0 = arith.constant 0 : index
    %0 = vector.load %arg1[%c0, %c0_0] : memref<64x192xf32, #tpu.memory_space<vmem>>, vector<64x192xf32>
    %cst = arith.constant dense<0.000000e+00> : vector<64xf32>
    %1 = vector.multi_reduction <add>, %0, %cst [1] : vector<64x192xf32> to vector<64xf32>
    %2 = vector.shape_cast %1 : vector<64xf32> to vector<64x1xf32>
    %cst_1 = arith.constant 1.920000e+02 : f32
    %3 = vector.broadcast %cst_1 : f32 to vector<64x1xf32>
    %4 = arith.divf %2, %3 : vector<64x1xf32>
    %5 = vector.broadcast %4 : vector<64x1xf32> to vector<64x192xf32>
    %6 = arith.subf %0, %5 : vector<64x192xf32>
    %7 = arith.mulf %6, %6 : vector<64x192xf32>
    %cst_2 = arith.constant dense<0.000000e+00> : vector<64xf32>
    %8 = vector.multi_reduction <add>, %7, %cst_2 [1] : vector<64x192xf32> to vector<64xf32>
    %9 = vector.shape_cast %8 : vector<64xf32> to vector<64x1xf32>
    %cst_3 = arith.constant 1.920000e+02 : f32
    %10 = vector.broadcast %cst_3 : f32 to vector<64x1xf32>
    %11 = arith.divf %9, %10 : vector<64x1xf32>
    %12 = vector.broadcast %4 : vector<64x1xf32> to vector<64x192xf32>
    %13 = arith.subf %0, %12 : vector<64x192xf32>
    %cst_4 = arith.constant 9.99999974E-6 : f32
    %14 = vector.broadcast %cst_4 : f32 to vector<64x1xf32>
    %15 = arith.addf %11, %14 : vector<64x1xf32>
    %16 = math.rsqrt %15 : vector<64x1xf32>
    %17 = vector.broadcast %16 : vector<64x1xf32> to vector<64x192xf32>
    %18 = arith.mulf %13, %17 : vector<64x192xf32>
    %c0_5 = arith.constant 0 : index
    %c0_6 = arith.constant 0 : index
    %19 = vector.load %arg2[%c0_5, %c0_6] : memref<192x128xf32, #tpu.memory_space<vmem>>, vector<192x128xf32>
    %cst_7 = arith.constant dense<0.000000e+00> : vector<64x128xf32>
    %20 = tpu.matmul %18, %19, %cst_7 {dimension_numbers = #tpu.dot_dimension_numbers<[1], [0], [0], [1], [0, 0, 1, 1], [], []>} : vector<64x192xf32>, vector<192x128xf32>, vector<64x128xf32> -> vector<64x128xf32>
    %c0_8 = arith.constant 0 : index
    %c0_9 = arith.constant 0 : index
    %21 = vector.load %arg3[%c0_8, %c0_9] : memref<1x128xf32, #tpu.memory_space<vmem>>, vector<1x128xf32>
    %22 = vector.broadcast %21 : vector<1x128xf32> to vector<64x128xf32>
    %23 = arith.addf %20, %22 : vector<64x128xf32>
    %cst_10 = arith.constant dense<0.000000e+00> : vector<64xf32>
    %24 = vector.multi_reduction <add>, %23, %cst_10 [1] : vector<64x128xf32> to vector<64xf32>
    %25 = vector.shape_cast %24 : vector<64xf32> to vector<64x1xf32>
    %cst_11 = arith.constant 1.280000e+02 : f32
    %26 = vector.broadcast %cst_11 : f32 to vector<64x1xf32>
    %27 = arith.divf %25, %26 : vector<64x1xf32>
    %28 = vector.broadcast %27 : vector<64x1xf32> to vector<64x128xf32>
    %29 = arith.subf %23, %28 : vector<64x128xf32>
    %30 = arith.mulf %29, %29 : vector<64x128xf32>
    %cst_12 = arith.constant dense<0.000000e+00> : vector<64xf32>
    %31 = vector.multi_reduction <add>, %30, %cst_12 [1] : vector<64x128xf32> to vector<64xf32>
    %32 = vector.shape_cast %31 : vector<64xf32> to vector<64x1xf32>
    %cst_13 = arith.constant 1.280000e+02 : f32
    %33 = vector.broadcast %cst_13 : f32 to vector<64x1xf32>
    %34 = arith.divf %32, %33 : vector<64x1xf32>
    %35 = vector.broadcast %27 : vector<64x1xf32> to vector<64x128xf32>
    %36 = arith.subf %23, %35 : vector<64x128xf32>
    %cst_14 = arith.constant 9.99999974E-6 : f32
    %37 = vector.broadcast %cst_14 : f32 to vector<64x1xf32>
    %38 = arith.addf %34, %37 : vector<64x1xf32>
    %39 = math.rsqrt %38 : vector<64x1xf32>
    %40 = vector.broadcast %39 : vector<64x1xf32> to vector<64x128xf32>
    %41 = arith.mulf %36, %40 : vector<64x128xf32>
    %c0_15 = arith.constant 0 : index
    %c0_16 = arith.constant 0 : index
    %42 = vector.load %arg4[%c0_15, %c0_16] : memref<1x128xf32, #tpu.memory_space<vmem>>, vector<1x128xf32>
    %43 = vector.broadcast %42 : vector<1x128xf32> to vector<64x128xf32>
    %44 = arith.mulf %41, %43 : vector<64x128xf32>
    %c0_17 = arith.constant 0 : index
    %c0_18 = arith.constant 0 : index
    %45 = vector.load %arg5[%c0_17, %c0_18] : memref<1x128xf32, #tpu.memory_space<vmem>>, vector<1x128xf32>
    %46 = vector.broadcast %45 : vector<1x128xf32> to vector<64x128xf32>
    %47 = arith.addf %44, %46 : vector<64x128xf32>
    %c0_19 = arith.constant 0 : index
    %c0_20 = arith.constant 0 : index
    %48 = vector.load %arg6[%c0_19, %c0_20] : memref<64x128xf32, #tpu.memory_space<vmem>>, vector<64x128xf32>
    tpu.vector_store %arg6[%c0_19, %c0_20], %47 {strides = array<i32>} : memref<64x128xf32, #tpu.memory_space<vmem>>, vector<64x128xf32>,
    return
  }
  func.func @transform_0(%arg0: i32) -> (i32, i32) {
    %c0_i32 = arith.constant 0 : i32
    %c0_i32_0 = arith.constant 0 : i32
    return %arg0, %c0_i32 : i32, i32
  }
  func.func @transform_1(%arg0: i32) -> (i32, i32) {
    %c0_i32 = arith.constant 0 : i32
    %c0_i32_0 = arith.constant 0 : i32
    %c0_i32_1 = arith.constant 0 : i32
    return %c0_i32, %c0_i32_0 : i32, i32
  }
  func.func @transform_2(%arg0: i32) -> (i32, i32) {
    %c0_i32 = arith.constant 0 : i32
    %c0_i32_0 = arith.constant 0 : i32
    %c0_i32_1 = arith.constant 0 : i32
    return %c0_i32, %c0_i32_0 : i32, i32
  }
  func.func @transform_3(%arg0: i32) -> (i32, i32) {
    %c0_i32 = arith.constant 0 : i32
    %c0_i32_0 = arith.constant 0 : i32
    %c0_i32_1 = arith.constant 0 : i32
    return %c0_i32, %c0_i32_0 : i32, i32
  }
  func.func @transform_4(%arg0: i32) -> (i32, i32) {
    %c0_i32 = arith.constant 0 : i32
    %c0_i32_0 = arith.constant 0 : i32
    %c0_i32_1 = arith.constant 0 : i32
    return %c0_i32, %c0_i32_0 : i32, i32
  }
  func.func @transform_5(%arg0: i32) -> (i32, i32) {
    %c0_i32 = arith.constant 0 : i32
    %c0_i32_0 = arith.constant 0 : i32
    return %arg0, %c0_i32 : i32, i32
  }
}

</mosaic_0001>

<llo_original>
// kernel: tpu_custom_call.1
$region0: #{tpu_custom_call.1}
  #allocation0 [shape = 'u32[]', space=smem, size = 0x4, offset = 0x4, fixed_abs, tag = 'smem constant byte address 0x4 - core index']
  #allocation1 [shape = 'u32[144,128]{1,0:T(1,128)}', space=vmem, size = 0x12000, scoped, tag = 'internal scratch']
  %s0 = inlined_call_operand.vmem [shape: f32[128,192], index: 0, kind: input, shape index: {}]
  %s1 = inlined_call_operand.vmem [shape: f32[192,128], index: 1, kind: input, shape index: {}]
  %s2 = inlined_call_operand.vmem [shape: f32[1,128], index: 2, kind: input, shape index: {}]
  %s3 = inlined_call_operand.vmem [shape: f32[1,128], index: 3, kind: input, shape index: {}]
  %s4 = inlined_call_operand.vmem [shape: f32[1,128], index: 4, kind: input, shape index: {}]
  %s5 = inlined_call_operand.hbm [shape: f32[128,128], index: 5, kind: output, shape index: {}]
  %s6 = sld [smem:[#allocation0]]
  $region53: #{tpu_custom_call.1} parent=0
    _
  %s8 = ssub.s32 1, %s6
  %s9 = scalar_select 0, %s8, %s6
  $region1: #{tpu_custom_call.1} parent=0
    #allocation2 [shape = 'u8[65536]{0}', space=vmem, size = 0x10000, scoped, tag = 'output window, operand 0']
    #allocation3 [shape = 's32[2]{0}', space=sflag, size = 0x8, scoped, tag = 'scoped memory for tpu_custom_call.1']
    %10 = vsyncpa [#allocation3], 0
    %s11 = scalar_lea.sflag [#allocation3], 1
    %12 = vsyncpa %s11, 0
    loop: start=0, step=1, limit=4
    $region2: #{tpu_custom_call.1} parent=1 // loop_pre_header
      _
    $region3: #{tpu_custom_call.1} parent=1 // loop_header
      %s14 = sphi 0, %s18
      %p15 = scmp.ge.s32.totalorder %s14, 4
      %s24 = sphi 0, %s26
      %s27 = sphi 0, %s24
      %s28 = sphi 0, %s27
      %s44 = sphi 0, %s28
      %s48 = sphi 0, %s48
      %s50 = sphi 0, %s48
      %s51 = sphi 0, %s50
      %s65 = sphi 0, %s51
      %s69 = sphi 0, %s69
      %s71 = sphi 0, %s69
      %s72 = sphi 0, %s71
      %s86 = sphi 0, %s72
      %s90 = sphi 0, %s90
      %s92 = sphi 0, %s90
      %s93 = sphi 0, %s92
      %s107 = sphi 0, %s93
      %s111 = sphi 0, %s111
      %s113 = sphi 0, %s111
      %s114 = sphi 0, %s113
      %s128 = sphi 0, %s114
      %s134 = sphi 0, %s136
      %s137 = sphi 0, %s134
      %s138 = sphi 0, %s137
      %s154 = sphi 0, %s138
    $region4: #{tpu_custom_call.1} parent=1 // loop_header_branch
      %17 = sbr.rel (%p15) target = $region8
    $region5: #{tpu_custom_call.1} parent=1 // loop_body
      %s19 = ssub.s32 %s14, 1
      %s20 = ssub.s32 %s14, 2
      %s21 = sadd.s32 %s14, 1
      %s22 = ssub.s32 %s14, %s21
      %p23 = scmp.eq.s32.totalorder %s22, 0
      %s25 = sadd.s32 %s24, 1
      %s26 = scalar_select %p23, %s24, %s25
      %p29 = pneg %p23
      %p30 = scmp.eq.s32.totalorder %s14, 1
      %p31 = por %p29, %p30
      %p32 = scmp.ne.s32.totalorder %s24, %s27
      %p33 = scmp.eq.s32.totalorder %s14, 0
      %p34 = por %p32, %p33
      %p35 = scmp.ne.s32.totalorder %s24, %s27
      %p36 = scmp.eq.s32.totalorder %s19, 1
      %p37 = por %p35, %p36
      %p38 = scmp.ne.s32.totalorder %s27, %s28
      %p39 = scmp.eq.s32.totalorder %s19, 0
      %p40 = por %p38, %p39
      %p41 = scmp.ne.s32.totalorder %s27, %s28
      %p42 = scmp.eq.s32.totalorder %s20, 1
      %p43 = por %p41, %p42
      %p45 = scmp.ne.s32.totalorder %s28, %s44
      %p46 = scmp.eq.s32.totalorder %s20, 0
      %p47 = por %p45, %p46
      %s49 = sadd.s32 %s48, 1
      %p52 = scmp.eq.s32.totalorder %s14, 1
      %p53 = scmp.ne.s32.totalorder %s48, %s50
      %p54 = scmp.eq.s32.totalorder %s14, 0
      %p55 = por %p53, %p54
      %p56 = scmp.ne.s32.totalorder %s48, %s50
      %p57 = scmp.eq.s32.totalorder %s19, 1
      %p58 = por %p56, %p57
      %p59 = scmp.ne.s32.totalorder %s50, %s51
      %p60 = scmp.eq.s32.totalorder %s19, 0
      %p61 = por %p59, %p60
      %p62 = scmp.ne.s32.totalorder %s50, %s51
      %p63 = scmp.eq.s32.totalorder %s20, 1
      %p64 = por %p62, %p63
      %p66 = scmp.ne.s32.totalorder %s51, %s65
      %p67 = scmp.eq.s32.totalorder %s20, 0
      %p68 = por %p66, %p67
      %s70 = sadd.s32 %s69, 1
      %p73 = scmp.eq.s32.totalorder %s14, 1
      %p74 = scmp.ne.s32.totalorder %s69, %s71
      %p75 = scmp.eq.s32.totalorder %s14, 0
      %p76 = por %p74, %p75
      %p77 = scmp.ne.s32.totalorder %s69, %s71
      %p78 = scmp.eq.s32.totalorder %s19, 1
      %p79 = por %p77, %p78
      %p80 = scmp.ne.s32.totalorder %s71, %s72
      %p81 = scmp.eq.s32.totalorder %s19, 0
      %p82 = por %p80, %p81
      %p83 = scmp.ne.s32.totalorder %s71, %s72
      %p84 = scmp.eq.s32.totalorder %s20, 1
      %p85 = por %p83, %p84
      %p87 = scmp.ne.s32.totalorder %s72, %s86
      %p88 = scmp.eq.s32.totalorder %s20, 0
      %p89 = por %p87, %p88
      %s91 = sadd.s32 %s90, 1
      %p94 = scmp.eq.s32.totalorder %s14, 1
      %p95 = scmp.ne.s32.totalorder %s90, %s92
      %p96 = scmp.eq.s32.totalorder %s14, 0
      %p97 = por %p95, %p96
      %p98 = scmp.ne.s32.totalorder %s90, %s92
      %p99 = scmp.eq.s32.totalorder %s19, 1
      %p100 = por %p98, %p99
      %p101 = scmp.ne.s32.totalorder %s92, %s93
      %p102 = scmp.eq.s32.totalorder %s19, 0
      %p103 = por %p101, %p102
      %p104 = scmp.ne.s32.totalorder %s92, %s93
      %p105 = scmp.eq.s32.totalorder %s20, 1
      %p106 = por %p104, %p105
      %p108 = scmp.ne.s32.totalorder %s93, %s107
      %p109 = scmp.eq.s32.totalorder %s20, 0
      %p110 = por %p108, %p109
      %s112 = sadd.s32 %s111, 1
      %p115 = scmp.eq.s32.totalorder %s14, 1
      %p116 = scmp.ne.s32.totalorder %s111, %s113
      %p117 = scmp.eq.s32.totalorder %s14, 0
      %p118 = por %p116, %p117
      %p119 = scmp.ne.s32.totalorder %s111, %s113
      %p120 = scmp.eq.s32.totalorder %s19, 1
      %p121 = por %p119, %p120
      %p122 = scmp.ne.s32.totalorder %s113, %s114
      %p123 = scmp.eq.s32.totalorder %s19, 0
      %p124 = por %p122, %p123
      %p125 = scmp.ne.s32.totalorder %s113, %s114
      %p126 = scmp.eq.s32.totalorder %s20, 1
      %p127 = por %p125, %p126
      %p129 = scmp.ne.s32.totalorder %s114, %s128
      %p130 = scmp.eq.s32.totalorder %s20, 0
      %p131 = por %p129, %p130
      %s132 = ssub.s32 %s14, %s21
      %p133 = scmp.eq.s32.totalorder %s132, 0
      %s135 = sadd.s32 %s134, 1
      %s136 = scalar_select %p133, %s134, %s135
      %p139 = pneg %p133
      %p140 = scmp.eq.s32.totalorder %s14, 1
      %p141 = por %p139, %p140
      %p142 = scmp.ne.s32.totalorder %s134, %s137
      %p143 = scmp.eq.s32.totalorder %s14, 0
      %p144 = por %p142, %p143
      %p145 = scmp.ne.s32.totalorder %s134, %s137
      %p146 = scmp.eq.s32.totalorder %s19, 1
      %p147 = por %p145, %p146
      %p148 = scmp.ne.s32.totalorder %s137, %s138
      %p149 = scmp.eq.s32.totalorder %s19, 0
      %p150 = por %p148, %p149
      %p151 = scmp.ne.s32.totalorder %s137, %s138
      %p152 = scmp.eq.s32.totalorder %s20, 1
      %p153 = por %p151, %p152
      %p155 = scmp.ne.s32.totalorder %s138, %s154
      %p156 = scmp.eq.s32.totalorder %s20, 0
      %p157 = por %p155, %p156
      %p158 = scmp.le.s32.totalorder 1, %s14
      %p159 = scmp.lt.s32.totalorder %s14, 3
      %p160 = pnand %p158, %p159
      %p161 = pneg %p160
      // Predicated region
      $region9: #{tpu_custom_call.1} parent=5 // pred_check
        _
      $region10: #{tpu_custom_call.1} parent=5 // pred_check_branch
        %163 = sbr.rel (%p160) target = $region12
      $region11: #{tpu_custom_call.1} parent=5 // pred_region
        %s164 = ssub.s32 %s14, 1
        // Predicated region
        $region13: #{tpu_custom_call.1} parent=11 // pred_check
          %p165 = pneg %p61
        $region14: #{tpu_custom_call.1} parent=11 // pred_check_branch
          %167 = sbr.rel (%p165) target = $region16
        $region15: #{tpu_custom_call.1} parent=11 // pred_region
          _
        $region16: #{tpu_custom_call.1} parent=11 // pred_fallthru
          _
        // Predicated region
        $region17: #{tpu_custom_call.1} parent=11 // pred_check
          %p168 = pneg %p82
        $region18: #{tpu_custom_call.1} parent=11 // pred_check_branch
          %170 = sbr.rel (%p168) target = $region20
        $region19: #{tpu_custom_call.1} parent=11 // pred_region
          _
        $region20: #{tpu_custom_call.1} parent=11 // pred_fallthru
          _
        // Predicated region
        $region21: #{tpu_custom_call.1} parent=11 // pred_check
          %p171 = pneg %p103
        $region22: #{tpu_custom_call.1} parent=11 // pred_check_branch
          %173 = sbr.rel (%p171) target = $region24
        $region23: #{tpu_custom_call.1} parent=11 // pred_region
          _
        $region24: #{tpu_custom_call.1} parent=11 // pred_fallthru
          _
        // Predicated region
        $region25: #{tpu_custom_call.1} parent=11 // pred_check
          %p174 = pneg %p124
        $region26: #{tpu_custom_call.1} parent=11 // pred_check_branch
          %176 = sbr.rel (%p174) target = $region28
        $region27: #{tpu_custom_call.1} parent=11 // pred_region
          _
        $region28: #{tpu_custom_call.1} parent=11 // pred_fallthru
          _
      $region12: #{tpu_custom_call.1} parent=5 // pred_fallthru
        _
      %p177 = scmp.lt.s32.totalorder %s14, 2
      // Predicated region
      $region29: #{tpu_custom_call.1} parent=5 // pred_check
        %p178 = pneg %p177
      $region30: #{tpu_custom_call.1} parent=5 // pred_check_branch
        %180 = sbr.rel (%p178) target = $region32
      $region31: #{tpu_custom_call.1} parent=5 // pred_region
        // Predicated region
        $region33: #{tpu_custom_call.1} parent=31 // pred_check
          %p181 = pneg %p34
        $region34: #{tpu_custom_call.1} parent=31 // pred_check_branch
          %183 = sbr.rel (%p181) target = $region36
        $region35: #{tpu_custom_call.1} parent=31 // pred_region
          %s184 = smul.u32 8, %s14
          %p185 = scmp.lt.s32.totalorder %s184, 15
          %s186 = scalar_select %p185, %s184, 15
          %s187 = smul.addr %s186, 2
          %s188 = smul.addr %s187, 8
          %s189 = scalar_lea.vmem %s0, %s188
          %s190 = smul.u32 8, %s14
        $region36: #{tpu_custom_call.1} parent=31 // pred_fallthru
          _
      $region32: #{tpu_custom_call.1} parent=5 // pred_fallthru
        _
      %p191 = scmp.le.s32.totalorder 1, %s14
      %p192 = scmp.lt.s32.totalorder %s14, 3
      %p193 = pnand %p191, %p192
      %p194 = pneg %p193
      // Predicated region
      $region37: #{tpu_custom_call.1} parent=5 // pred_check
        _
      $region38: #{tpu_custom_call.1} parent=5 // pred_check_branch
        %196 = sbr.rel (%p193) target = $region40
      $region39: #{tpu_custom_call.1} parent=5 // pred_region
        %s197 = ssub.s32 %s14, 1
        %s198 = smul.u32 8, %s19
        %p199 = scmp.lt.s32.totalorder %s198, 15
        %s200 = scalar_select %p199, %s198, 15
        %s201 = smul.addr %s200, 2
        %s202 = smul.addr %s201, 8
        %s203 = scalar_lea.vmem %s0, %s202
        %p204 = pneg %p40
        %p205 = pneg %p37
        %p206 = pneg %p61
        %p207 = pneg %p58
        %p208 = pneg %p82
        %p209 = pneg %p79
        %p210 = pneg %p103
        %p211 = pneg %p100
        %p212 = pneg %p124
        %p213 = pneg %p121
        %p214 = pneg %p150
        %p215 = pneg %p147
        %s216 = sand.u32 %s137, 1
        %s217 = scalar_lea.sflag [#allocation3], %s216
        %s218 = sand.u32 %s137, 1
        %s219 = smul.addr %s218, 64
        %s220 = scalar_lea.vmem [#allocation2], %s219
        %s221 = smul.u32 8, %s19
        %p222 = scmp.lt.s32.totalorder %s221, 15
        %s223 = scalar_select %p222, %s221, 15
        %s224 = smul.addr %s223, 2
        %s225 = smul.addr %s224, 8
        %s226 = scalar_lea.vmem %s0, %s225
        %s227 = smul.u32 8, %s19
        %s228 = smul.u32 8, %s19
        %v229 = vld [vmem:[%s226] sm:$0xff]
        %v230 = vld [vmem:[%s226 + $0x8] sm:$0xff]
        %v231 = vld [vmem:[%s226 + $0x10] sm:$0xff]
        %v232 = vld [vmem:[%s226 + $0x18] sm:$0xff]
        %v233 = vld [vmem:[%s226 + $0x20] sm:$0xff]
        %v234 = vld [vmem:[%s226 + $0x28] sm:$0xff]
        %v235 = vld [vmem:[%s226 + $0x30] sm:$0xff]
        %v236 = vld [vmem:[%s226 + $0x38] sm:$0xff]
        %v237 = vld [vmem:[%s226 + $0x40] sm:$0xff]
        %v238 = vld [vmem:[%s226 + $0x48] sm:$0xff]
        %v239 = vld [vmem:[%s226 + $0x50] sm:$0xff]
        %v240 = vld [vmem:[%s226 + $0x58] sm:$0xff]
        %v241 = vld [vmem:[%s226 + $0x60] sm:$0xff]
        %v242 = vld [vmem:[%s226 + $0x68] sm:$0xff]
        %v243 = vld [vmem:[%s226 + $0x70] sm:$0xff]
        %v244 = vld [vmem:[%s226 + $0x78] sm:$0xff]
        %vm245 = vcmask 523264
        %v246 = vsel %vm245, %v230, 0.0
        %v247 = vadd.f32 %v229, %v246
        %248 = vadd.xlane.f32.xlu0 %v247
        %v249 = vpop.xlane.xlu0 %248
        %v250 = vsel %vm245, %v232, 0.0
        %v251 = vadd.f32 %v231, %v250
        %252 = vadd.xlane.f32.xlu0 %v251
        %v253 = vpop.xlane.xlu0 %252
        %v254 = vsel %vm245, %v234, 0.0
        %v255 = vadd.f32 %v233, %v254
        %256 = vadd.xlane.f32.xlu0 %v255
        %v257 = vpop.xlane.xlu0 %256
        %v258 = vsel %vm245, %v236, 0.0
        %v259 = vadd.f32 %v235, %v258
        %260 = vadd.xlane.f32.xlu0 %v259
        %v261 = vpop.xlane.xlu0 %260
        %v262 = vsel %vm245, %v238, 0.0
        %v263 = vadd.f32 %v237, %v262
        %264 = vadd.xlane.f32.xlu0 %v263
        %v265 = vpop.xlane.xlu0 %264
        %v266 = vsel %vm245, %v240, 0.0
        %v267 = vadd.f32 %v239, %v266
        %268 = vadd.xlane.f32.xlu0 %v267
        %v269 = vpop.xlane.xlu0 %268
        %v270 = vsel %vm245, %v242, 0.0
        %v271 = vadd.f32 %v241, %v270
        %272 = vadd.xlane.f32.xlu0 %v271
        %v273 = vpop.xlane.xlu0 %272
        %v274 = vsel %vm245, %v244, 0.0
        %v275 = vadd.f32 %v243, %v274
        %276 = vadd.xlane.f32.xlu0 %v275
        %v277 = vpop.xlane.xlu0 %276
        %v278 = vrcp.pop 192.0
        %v279 = vmul.f32 %v249, %v278
        %v280 = vmul.f32 %v253, %v278
        %v281 = vmul.f32 %v257, %v278
        %v282 = vmul.f32 %v261, %v278
        %v283 = vmul.f32 %v265, %v278
        %v284 = vmul.f32 %v269, %v278
        %v285 = vmul.f32 %v273, %v278
        %v286 = vmul.f32 %v277, %v278
        %v287 = vsub.f32 %v229, %v279
        %v288 = vsub.f32 %v230, %v279
        %v289 = vsub.f32 %v231, %v280
        %v290 = vsub.f32 %v232, %v280
        %v291 = vsub.f32 %v233, %v281
        %v292 = vsub.f32 %v234, %v281
        %v293 = vsub.f32 %v235, %v282
        %v294 = vsub.f32 %v236, %v282
        %v295 = vsub.f32 %v237, %v283
        %v296 = vsub.f32 %v238, %v283
        %v297 = vsub.f32 %v239, %v284
        %v298 = vsub.f32 %v240, %v284
        %v299 = vsub.f32 %v241, %v285
        %v300 = vsub.f32 %v242, %v285
        %v301 = vsub.f32 %v243, %v286
        %v302 = vsub.f32 %v244, %v286
        %v303 = vmul.f32 %v287, %v287
        %v304 = vmul.f32 %v288, %v288
        %v305 = vmul.f32 %v289, %v289
        %v306 = vmul.f32 %v290, %v290
        %v307 = vmul.f32 %v291, %v291
        %v308 = vmul.f32 %v292, %v292
        %v309 = vmul.f32 %v293, %v293
        %v310 = vmul.f32 %v294, %v294
        %v311 = vmul.f32 %v295, %v295
        %v312 = vmul.f32 %v296, %v296
        %v313 = vmul.f32 %v297, %v297
        %v314 = vmul.f32 %v298, %v298
        %v315 = vmul.f32 %v299, %v299
        %v316 = vmul.f32 %v300, %v300
        %v317 = vmul.f32 %v301, %v301
        %v318 = vmul.f32 %v302, %v302
        %v319 = vsel %vm245, %v304, 0.0
        %v320 = vadd.f32 %v303, %v319
        %321 = vadd.xlane.f32.xlu0 %v320
        %v322 = vpop.xlane.xlu0 %321
        %v323 = vsel %vm245, %v306, 0.0
        %v324 = vadd.f32 %v305, %v323
        %325 = vadd.xlane.f32.xlu0 %v324
        %v326 = vpop.xlane.xlu0 %325
        %v327 = vsel %vm245, %v308, 0.0
        %v328 = vadd.f32 %v307, %v327
        %329 = vadd.xlane.f32.xlu0 %v328
        %v330 = vpop.xlane.xlu0 %329
        %v331 = vsel %vm245, %v310, 0.0
        %v332 = vadd.f32 %v309, %v331
        %333 = vadd.xlane.f32.xlu0 %v332
        %v334 = vpop.xlane.xlu0 %333
        %v335 = vsel %vm245, %v312, 0.0
        %v336 = vadd.f32 %v311, %v335
        %337 = vadd.xlane.f32.xlu0 %v336
        %v338 = vpop.xlane.xlu0 %337
        %v339 = vsel %vm245, %v314, 0.0
        %v340 = vadd.f32 %v313, %v339
        %341 = vadd.xlane.f32.xlu0 %v340
        %v342 = vpop.xlane.xlu0 %341
        %v343 = vsel %vm245, %v316, 0.0
        %v344 = vadd.f32 %v315, %v343
        %345 = vadd.xlane.f32.xlu0 %v344
        %v346 = vpop.xlane.xlu0 %345
        %v347 = vsel %vm245, %v318, 0.0
        %v348 = vadd.f32 %v317, %v347
        %349 = vadd.xlane.f32.xlu0 %v348
        %v350 = vpop.xlane.xlu0 %349
        %v351 = vmul.f32 %v322, %v278
        %v352 = vmul.f32 %v326, %v278
        %v353 = vmul.f32 %v330, %v278
        %v354 = vmul.f32 %v334, %v278
        %v355 = vmul.f32 %v338, %v278
        %v356 = vmul.f32 %v342, %v278
        %v357 = vmul.f32 %v346, %v278
        %v358 = vmul.f32 %v350, %v278
        %v359 = vadd.f32 %v351, 1e-05
        %v360 = vadd.f32 %v352, 1e-05
        %v361 = vadd.f32 %v353, 1e-05
        %v362 = vadd.f32 %v354, 1e-05
        %v363 = vadd.f32 %v355, 1e-05
        %v364 = vadd.f32 %v356, 1e-05
        %v365 = vadd.f32 %v357, 1e-05
        %v366 = vadd.f32 %v358, 1e-05
        %v367 = vrsqrt.pop %v359
        %v368 = vrsqrt.pop %v360
        %v369 = vrsqrt.pop %v361
        %v370 = vrsqrt.pop %v362
        %v371 = vrsqrt.pop %v363
        %v372 = vrsqrt.pop %v364
        %v373 = vrsqrt.pop %v365
        %v374 = vrsqrt.pop %v366
        %v375 = vmul.f32 %v287, %v367
        %v376 = vmul.f32 %v288, %v367
        %v377 = vmul.f32 %v289, %v368
        %v378 = vmul.f32 %v290, %v368
        %v379 = vmul.f32 %v291, %v369
        %v380 = vmul.f32 %v292, %v369
        %v381 = vmul.f32 %v293, %v370
        %v382 = vmul.f32 %v294, %v370
        %v383 = vmul.f32 %v295, %v371
        %v384 = vmul.f32 %v296, %v371
        %v385 = vmul.f32 %v297, %v372
        %v386 = vmul.f32 %v298, %v372
        %v387 = vmul.f32 %v299, %v373
        %v388 = vmul.f32 %v300, %v373
        %v389 = vmul.f32 %v301, %v374
        %v390 = vmul.f32 %v302, %v374
        %v391 = vld [vmem:[%s1] sm:$0xff]
        %v392 = vld [vmem:[%s1 + $0x8] sm:$0xff]
        %v393 = vld [vmem:[%s1 + $0x10] sm:$0xff]
        %v394 = vld [vmem:[%s1 + $0x18] sm:$0xff]
        %v395 = vld [vmem:[%s1 + $0x20] sm:$0xff]
        %v396 = vld [vmem:[%s1 + $0x28] sm:$0xff]
        %v397 = vld [vmem:[%s1 + $0x30] sm:$0xff]
        %v398 = vld [vmem:[%s1 + $0x38] sm:$0xff]
        %v399 = vld [vmem:[%s1 + $0x40] sm:$0xff]
        %v400 = vld [vmem:[%s1 + $0x48] sm:$0xff]
        %v401 = vld [vmem:[%s1 + $0x50] sm:$0xff]
        %v402 = vld [vmem:[%s1 + $0x58] sm:$0xff]
        %v403 = vld [vmem:[%s1 + $0x60] sm:$0xff]
        %v404 = vld [vmem:[%s1 + $0x68] sm:$0xff]
        %v405 = vld [vmem:[%s1 + $0x70] sm:$0xff]
        %v406 = vld [vmem:[%s1 + $0x78] sm:$0xff]
        %v407 = vld [vmem:[%s1 + $0x80] sm:$0xff]
        %v408 = vld [vmem:[%s1 + $0x88] sm:$0xff]
        %v409 = vld [vmem:[%s1 + $0x90] sm:$0xff]
        %v410 = vld [vmem:[%s1 + $0x98] sm:$0xff]
        %v411 = vld [vmem:[%s1 + $0xa0] sm:$0xff]
        %v412 = vld [vmem:[%s1 + $0xa8] sm:$0xff]
        %v413 = vld [vmem:[%s1 + $0xb0] sm:$0xff]
        %v414 = vld [vmem:[%s1 + $0xb8] sm:$0xff]
        %v415 = vld [vmem:[%s2] sm:$0x1]
        %v417 = vlaneseq
        %v418 = vshrl.u32 %v417, 7
        %v419 = vsub.s32 0, %v418
        %v420 = vrot.slane %v415, %v419
        %v423 = vsel %vm245, %v376, 0
        %v426 = vsel %vm245, %v378, 0
        %v429 = vsel %vm245, %v380, 0
        %v432 = vsel %vm245, %v382, 0
        %v435 = vsel %vm245, %v384, 0
        %v438 = vsel %vm245, %v386, 0
        %v441 = vsel %vm245, %v388, 0
        %v444 = vsel %vm245, %v390, 0
        %446 = vmatprep.subr.mxu0 0.0
        %447 = vmatpush1.msra.mxu0 %v406
        %448 = vmatprep.subr.mxu0 0.0
        %449 = vmatpush1.msra.mxu0 %v405
        %450 = vmatprep.subr.mxu0 0.0
        %451 = vmatpush1.msra.mxu0 %v404
        %452 = vmatprep.subr.mxu0 0.0
        %453 = vmatpush1.msra.mxu0 %v403
        %454 = vmatprep.subr.mxu0 0.0
        %455 = vmatpush1.msra.mxu0 %v402
        %456 = vmatprep.subr.mxu0 0.0
        %457 = vmatpush1.msra.mxu0 %v401
        %458 = vmatprep.subr.mxu0 0.0
        %459 = vmatpush1.msra.mxu0 %v400
        %460 = vmatprep.subr.mxu0 0.0
        %461 = vmatpush1.msra.mxu0 %v399
        %462 = vmatprep.subr.mxu0 0.0
        %463 = vmatpush1.msra.mxu0 %v398
        %464 = vmatprep.subr.mxu0 0.0
        %465 = vmatpush1.msra.mxu0 %v397
        %466 = vmatprep.subr.mxu0 0.0
        %467 = vmatpush1.msra.mxu0 %v396
        %468 = vmatprep.subr.mxu0 0.0
        %469 = vmatpush1.msra.mxu0 %v395
        %470 = vmatprep.subr.mxu0 0.0
        %471 = vmatpush1.msra.mxu0 %v394
        %472 = vmatprep.subr.mxu0 0.0
        %473 = vmatpush1.msra.mxu0 %v393
        %474 = vmatprep.subr.mxu0 0.0
        %475 = vmatpush1.msra.mxu0 %v392
        %476 = vmatprep.subr.mxu0 0.0
        %477 = vmatpush1.msra.mxu0 %v391
        %478 = vmatprep.subr.mxu0 0.0
        %479 = vmatpush2.msra.mxu0 0.0
        %480 = vmatprep.subr.mxu0 0.0
        %481 = vmatpush2.msra.mxu0 0.0
        %482 = vmatprep.subr.mxu0 0.0
        %483 = vmatpush2.msra.mxu0 0.0
        %484 = vmatprep.subr.mxu0 0.0
        %485 = vmatpush2.msra.mxu0 0.0
        %486 = vmatprep.subr.mxu0 0.0
        %487 = vmatpush2.msra.mxu0 0.0
        %488 = vmatprep.subr.mxu0 0.0
        %489 = vmatpush2.msra.mxu0 0.0
        %490 = vmatprep.subr.mxu0 0.0
        %491 = vmatpush2.msra.mxu0 0.0
        %492 = vmatprep.subr.mxu0 0.0
        %493 = vmatpush2.msra.mxu0 0.0
        %494 = vmatprep.subr.mxu0 0.0
        %495 = vmatpush2.msra.mxu0 %v414
        %496 = vmatprep.subr.mxu0 0.0
        %497 = vmatpush2.msra.mxu0 %v413
        %498 = vmatprep.subr.mxu0 0.0
        %499 = vmatpush2.msra.mxu0 %v412
        %500 = vmatprep.subr.mxu0 0.0
        %501 = vmatpush2.msra.mxu0 %v411
        %502 = vmatprep.subr.mxu0 0.0
        %503 = vmatpush2.msra.mxu0 %v410
        %504 = vmatprep.subr.mxu0 0.0
        %505 = vmatpush2.msra.mxu0 %v409
        %506 = vmatprep.subr.mxu0 0.0
        %507 = vmatpush2.msra.mxu0 %v408
        %508 = vmatprep.subr.mxu0 0.0
        %509 = vmatpush2.msra.mxu0 %v407
        %510 = vmatprep.mubr.f32.mxu0 %v423
        %511 = vmatmul.mubr.f32.gmra.mxu0 %v375
        %v512 = vpop.f32.mrf.mxu0
        %v513 = vadd.f32 %v420, %v512
        %v514 = vpop.f32.mrf.mxu0
        %515 = vmatprep.mubr.f32.mxu0 %v426
        %516 = vmatmul.mubr.f32.gmra.mxu0 %v377
        %v517 = vpop.f32.mrf.mxu0
        %v518 = vadd.f32 %v420, %v517
        %v519 = vpop.f32.mrf.mxu0
        %520 = vmatprep.mubr.f32.mxu0 %v429
        %521 = vmatmul.mubr.f32.gmra.mxu0 %v379
        %v522 = vpop.f32.mrf.mxu0
        %v523 = vadd.f32 %v420, %v522
        %v524 = vpop.f32.mrf.mxu0
        %525 = vmatprep.mubr.f32.mxu0 %v432
        %526 = vmatmul.mubr.f32.gmra.mxu0 %v381
        %v527 = vpop.f32.mrf.mxu0
        %v528 = vadd.f32 %v420, %v527
        %v529 = vpop.f32.mrf.mxu0
        %530 = vmatprep.mubr.f32.mxu0 %v435
        %531 = vmatmul.mubr.f32.gmra.mxu0 %v383
        %v532 = vpop.f32.mrf.mxu0
        %v533 = vadd.f32 %v420, %v532
        %v534 = vpop.f32.mrf.mxu0
        %535 = vmatprep.mubr.f32.mxu0 %v438
        %536 = vmatmul.mubr.f32.gmra.mxu0 %v385
        %v537 = vpop.f32.mrf.mxu0
        %v538 = vadd.f32 %v420, %v537
        %v539 = vpop.f32.mrf.mxu0
        %540 = vmatprep.mubr.f32.mxu0 %v441
        %541 = vmatmul.mubr.f32.gmra.mxu0 %v387
        %v542 = vpop.f32.mrf.mxu0
        %v543 = vadd.f32 %v420, %v542
        %v544 = vpop.f32.mrf.mxu0
        %545 = vmatprep.mubr.f32.mxu0 %v444
        %546 = vmatmul.mubr.f32.gmra.mxu0 %v389
        %v547 = vpop.f32.mrf.mxu0
        %v548 = vadd.f32 %v420, %v547
        %v549 = vpop.f32.mrf.mxu0
        %550 = vdwg.mxu0
        %551 = vadd.xlane.f32.xlu0 %v513
        %v552 = vpop.xlane.xlu0 %551
        %553 = vadd.xlane.f32.xlu0 %v518
        %v554 = vpop.xlane.xlu0 %553
        %555 = vadd.xlane.f32.xlu0 %v523
        %v556 = vpop.xlane.xlu0 %555
        %557 = vadd.xlane.f32.xlu0 %v528
        %v558 = vpop.xlane.xlu0 %557
        %559 = vadd.xlane.f32.xlu0 %v533
        %v560 = vpop.xlane.xlu0 %559
        %561 = vadd.xlane.f32.xlu0 %v538
        %v562 = vpop.xlane.xlu0 %561
        %563 = vadd.xlane.f32.xlu0 %v543
        %v564 = vpop.xlane.xlu0 %563
        %565 = vadd.xlane.f32.xlu0 %v548
        %v566 = vpop.xlane.xlu0 %565
        %v567 = vrcp.pop 128.0
        %v568 = vmul.f32 %v552, %v567
        %v569 = vmul.f32 %v554, %v567
        %v570 = vmul.f32 %v556, %v567
        %v571 = vmul.f32 %v558, %v567
        %v572 = vmul.f32 %v560, %v567
        %v573 = vmul.f32 %v562, %v567
        %v574 = vmul.f32 %v564, %v567
        %v575 = vmul.f32 %v566, %v567
        %v576 = vsub.f32 %v513, %v568
        %v577 = vsub.f32 %v518, %v569
        %v578 = vsub.f32 %v523, %v570
        %v579 = vsub.f32 %v528, %v571
        %v580 = vsub.f32 %v533, %v572
        %v581 = vsub.f32 %v538, %v573
        %v582 = vsub.f32 %v543, %v574
        %v583 = vsub.f32 %v548, %v575
        %v584 = vmul.f32 %v576, %v576
        %v585 = vmul.f32 %v577, %v577
        %v586 = vmul.f32 %v578, %v578
        %v587 = vmul.f32 %v579, %v579
        %v588 = vmul.f32 %v580, %v580
        %v589 = vmul.f32 %v581, %v581
        %v590 = vmul.f32 %v582, %v582
        %v591 = vmul.f32 %v583, %v583
        %592 = vadd.xlane.f32.xlu0 %v584
        %v593 = vpop.xlane.xlu0 %592
        %594 = vadd.xlane.f32.xlu0 %v585
        %v595 = vpop.xlane.xlu0 %594
        %596 = vadd.xlane.f32.xlu0 %v586
        %v597 = vpop.xlane.xlu0 %596
        %598 = vadd.xlane.f32.xlu0 %v587
        %v599 = vpop.xlane.xlu0 %598
        %600 = vadd.xlane.f32.xlu0 %v588
        %v601 = vpop.xlane.xlu0 %600
        %602 = vadd.xlane.f32.xlu0 %v589
        %v603 = vpop.xlane.xlu0 %602
        %604 = vadd.xlane.f32.xlu0 %v590
        %v605 = vpop.xlane.xlu0 %604
        %606 = vadd.xlane.f32.xlu0 %v591
        %v607 = vpop.xlane.xlu0 %606
        %v608 = vmul.f32 %v593, %v567
        %v609 = vmul.f32 %v595, %v567
        %v610 = vmul.f32 %v597, %v567
        %v611 = vmul.f32 %v599, %v567
        %v612 = vmul.f32 %v601, %v567
        %v613 = vmul.f32 %v603, %v567
        %v614 = vmul.f32 %v605, %v567
        %v615 = vmul.f32 %v607, %v567
        %v616 = vadd.f32 %v608, 1e-05
        %v617 = vadd.f32 %v609, 1e-05
        %v618 = vadd.f32 %v610, 1e-05
        %v619 = vadd.f32 %v611, 1e-05
        %v620 = vadd.f32 %v612, 1e-05
        %v621 = vadd.f32 %v613, 1e-05
        %v622 = vadd.f32 %v614, 1e-05
        %v623 = vadd.f32 %v615, 1e-05
        %v624 = vrsqrt.pop %v616
        %v625 = vrsqrt.pop %v617
        %v626 = vrsqrt.pop %v618
        %v627 = vrsqrt.pop %v619
        %v628 = vrsqrt.pop %v620
        %v629 = vrsqrt.pop %v621
        %v630 = vrsqrt.pop %v622
        %v631 = vrsqrt.pop %v623
        %v632 = vmul.f32 %v576, %v624
        %v633 = vmul.f32 %v577, %v625
        %v634 = vmul.f32 %v578, %v626
        %v635 = vmul.f32 %v579, %v627
        %v636 = vmul.f32 %v580, %v628
        %v637 = vmul.f32 %v581, %v629
        %v638 = vmul.f32 %v582, %v630
        %v639 = vmul.f32 %v583, %v631
        %v640 = vld [vmem:[%s3] sm:$0x1]
        %v642 = vlaneseq
        %v643 = vshrl.u32 %v642, 7
        %v644 = vsub.s32 0, %v643
        %v645 = vrot.slane %v640, %v644
        %v647 = vmul.f32 %v632, %v645
        %v648 = vmul.f32 %v633, %v645
        %v649 = vmul.f32 %v634, %v645
        %v650 = vmul.f32 %v635, %v645
        %v651 = vmul.f32 %v636, %v645
        %v652 = vmul.f32 %v637, %v645
        %v653 = vmul.f32 %v638, %v645
        %v654 = vmul.f32 %v639, %v645
        %v655 = vld [vmem:[%s4] sm:$0x1]
        %v657 = vlaneseq
        %v658 = vshrl.u32 %v657, 7
        %v659 = vsub.s32 0, %v658
        %v660 = vrot.slane %v655, %v659
        %v662 = vadd.f32 %v647, %v660
        %v663 = vadd.f32 %v648, %v660
        %v664 = vadd.f32 %v649, %v660
        %v665 = vadd.f32 %v650, %v660
        %v666 = vadd.f32 %v651, %v660
        %v667 = vadd.f32 %v652, %v660
        %v668 = vadd.f32 %v653, %v660
        %v669 = vadd.f32 %v654, %v660
        %670 = vst [vmem:[%s220] sm:$0xff] %v662
        %671 = vst [vmem:[%s220 + $0x8] sm:$0xff] %v663
        %672 = vst [vmem:[%s220 + $0x10] sm:$0xff] %v664
        %673 = vst [vmem:[%s220 + $0x18] sm:$0xff] %v665
        %674 = vst [vmem:[%s220 + $0x20] sm:$0xff] %v666
        %675 = vst [vmem:[%s220 + $0x28] sm:$0xff] %v667
        %676 = vst [vmem:[%s220 + $0x30] sm:$0xff] %v668
        %677 = vst [vmem:[%s220 + $0x38] sm:$0xff] %v669
        %s678 = sand.u32 %s137, 1
        %s679 = scalar_lea.sflag [#allocation3], %s678
        %s680 = sand.u32 %s137, 1
        %s681 = smul.addr %s680, 64
        %s682 = scalar_lea.vmem [#allocation2], %s681
        // Predicated region
        $region41: #{tpu_custom_call.1} parent=39 // pred_check
          %p683 = pneg %p147
        $region42: #{tpu_custom_call.1} parent=39 // pred_check_branch
          %685 = sbr.rel (%p683) target = $region44
        $region43: #{tpu_custom_call.1} parent=39 // pred_region
          %s686 = smul.u32 8, %s19
          %s688 = ssub.s32 1024, 1024
          %689 = vsyncadd %s679, %s688
          %s690 = smul.addr %s686, 128
          %s691 = scalar_lea.hbm %s5, %s690
          %s692 = sshll.u32 %s682, 4
          %s693 = int_to_ptr.vmem [resolvable:$true] %s692
          %698 = dma.vmem_to_hbm [thread:$0]  %s693, 1024, %s691, %s679, 128, 128, 8
        $region44: #{tpu_custom_call.1} parent=39 // pred_fallthru
          _
      $region40: #{tpu_custom_call.1} parent=5 // pred_fallthru
        _
      %p699 = scmp.le.s32.totalorder 2, %s14
      // Predicated region
      $region45: #{tpu_custom_call.1} parent=5 // pred_check
        %p700 = pneg %p699
      $region46: #{tpu_custom_call.1} parent=5 // pred_check_branch
        %702 = sbr.rel (%p700) target = $region48
      $region47: #{tpu_custom_call.1} parent=5 // pred_region
        %s703 = ssub.s32 %s14, 2
        // Predicated region
        $region49: #{tpu_custom_call.1} parent=47 // pred_check
          %p704 = pneg %p153
        $region50: #{tpu_custom_call.1} parent=47 // pred_check_branch
          %706 = sbr.rel (%p704) target = $region52
        $region51: #{tpu_custom_call.1} parent=47 // pred_region
          %s707 = sand.u32 %s138, 1
          %s708 = scalar_lea.sflag [#allocation3], %s707
          %s709 = sand.u32 %s138, 1
          %s710 = smul.addr %s709, 64
          %s711 = scalar_lea.vmem [#allocation2], %s710
          %712 = dma.done %s708, 1024
        $region52: #{tpu_custom_call.1} parent=47 // pred_fallthru
          _
      $region48: #{tpu_custom_call.1} parent=5 // pred_fallthru
        _
    $region6: #{tpu_custom_call.1} parent=1 // loop_footer
      %s18 = sadd.s32 1, %s14
    $region7: #{tpu_custom_call.1} parent=1 // loop_footer_branch
      %13 = sbr.rel target = $region3
    $region8: #{tpu_custom_call.1} parent=1 // loop_exit
      _
    %713 = vsyncpa [#allocation3], 1
    %s714 = scalar_lea.sflag [#allocation3], 1
    %715 = vsyncpa %s714, 1

</llo_original>
